<compile_context>
chip_gen: v7x
topology: tpu7x:2x2x1
jax: 0.10.0
libtpu: 0.0.40
codegen_flags: <defaults>
</compile_context>

<pallas_src>
import jax
import jax.numpy as jnp
from jax.experimental import pallas as pl
from jax.experimental.pallas import tpu as pltpu


def _dgr_sample_kernel(z_ref, noise_ref, zout_ref, kl_ref):
    # z_ref:     (1, 2, TR, L)   [mean slab ; logvar slab] for this tile
    # noise_ref: (1, TR, L)      standard-normal eps
    # zout_ref:  (1, TR, L)      sampled latent (input dtype)
    # kl_ref:    (1, 1, 1, L)    per-lane partial of (mean^2 + var - 1 - logvar)
    mean = z_ref[0, 0].astype(jnp.float32)
    logvar = jnp.clip(z_ref[0, 1].astype(jnp.float32), -30.0, 20.0)
    std = jnp.exp(0.5 * logvar)          # single EUP transcendental
    var = std * std                      # VPU mul instead of a second exp
    eps = noise_ref[0].astype(jnp.float32)
    zout_ref[0] = (mean + std * eps).astype(zout_ref.dtype)
    kl_ref[0, 0] = jnp.sum(mean * mean + var - 1.0 - logvar,
                           axis=0, keepdims=True)


def _dgr_mode_kernel(z_ref, zout_ref, kl_ref):
    # mode(): z_out = mean; no noise stream is read at all.
    mean_in = z_ref[0, 0]
    mean = mean_in.astype(jnp.float32)
    logvar = jnp.clip(z_ref[0, 1].astype(jnp.float32), -30.0, 20.0)
    var = jnp.exp(logvar)                # single EUP transcendental
    zout_ref[0] = mean_in.astype(zout_ref.dtype)
    kl_ref[0, 0] = jnp.sum(mean * mean + var - 1.0 - logvar,
                           axis=0, keepdims=True)


def _plan_layout(n, max_tile_elems=512 * 512):
    """Pick (rows, lanes, tile_rows) with rows*lanes == n.

    Prefers lanes % 128 == 0 and rows % 8 == 0 (dense vregs); row tiles are a
    multiple of 8 and capped so per-tile f32 footprint stays ~1 MiB.
    """
    rows, lanes = 1, n  # unaligned fallback: one full-width row (still valid)
    for cand in (512, 256, 128):
        if n % cand == 0 and (n // cand) % 8 == 0:
            lanes, rows = cand, n // cand
            break
    else:
        for cand in (512, 256, 128):
            if n % cand == 0:
                lanes, rows = cand, n // cand
                break
    tile_rows = rows
    max_rows = max(8, max_tile_elems // lanes)
    if rows > max_rows and rows % 8 == 0:
        for tr in range(max_rows - (max_rows % 8), 7, -8):
            if rows % tr == 0:
                tile_rows = tr
                break
    return rows, lanes, tile_rows


def diagonal_gaussian_regularizer(z, noise=None, sample=True):
    """Pallas equivalent of DiagonalGaussianRegularizer.forward.

    z:     (B, 2C, H, W) array (NCHW, like the PyTorch module)
    noise: (B, C, H, W) standard-normal draws used when sample=True.
    Returns (z_out, {'kl_loss': scalar}) with z_out shaped (B, C, H, W).
    """
    B, C2, H, W = z.shape
    assert C2 % 2 == 0, "channel dim must hold [mean; logvar]"
    C = C2 // 2
    N = C * H * W

    R, L, TR = _plan_layout(N)
    RB = R // TR
    grid = (B, RB)

    # Free reshape: chunk(z, 2, dim=1) halves are contiguous per batch element.
    z_r = z.reshape(B, 2, R, L)

    z_spec = pl.BlockSpec((1, 2, TR, L), lambda b, r: (b, 0, r, 0))
    slab_spec = pl.BlockSpec((1, TR, L), lambda b, r: (b, r, 0))
    kl_spec = pl.BlockSpec((1, 1, 1, L), lambda b, r: (b, r, 0, 0))

    out_shapes = (
        jax.ShapeDtypeStruct((B, R, L), z.dtype),
        jax.ShapeDtypeStruct((B, RB, 1, L), jnp.float32),
    )
    cparams = pltpu.CompilerParams(
        dimension_semantics=("parallel", "parallel"),
        vmem_limit_bytes=32 * 1024 * 1024,
    )

    if sample:
        if noise is None:
            # TODO(synk): torch.randn is drawn inside the module; here the eps
            # stream is generated host-side (deterministic key) and passed in.
            noise = jax.random.normal(jax.random.PRNGKey(0), (B, C, H, W),
                                      dtype=jnp.float32)
        noise_r = noise.reshape(B, R, L)
        z_out, kl_part = pl.pallas_call(
            _dgr_sample_kernel,
            grid_spec=pltpu.PrefetchScalarGridSpec(
                num_scalar_prefetch=0,
                grid=grid,
                in_specs=[z_spec, slab_spec],
                out_specs=[slab_spec, kl_spec],
            ),
            out_shape=out_shapes,
            compiler_params=cparams,
        )(z_r, noise_r)
    else:
        z_out, kl_part = pl.pallas_call(
            _dgr_mode_kernel,
            grid_spec=pltpu.PrefetchScalarGridSpec(
                num_scalar_prefetch=0,
                grid=grid,
                in_specs=[z_spec],
                out_specs=[slab_spec, kl_spec],
            ),
            out_shape=out_shapes,
            compiler_params=cparams,
        )(z_r)

    # Tiny deterministic wrapper-side reduction over the per-block partials.
    kl_loss = 0.5 * jnp.sum(kl_part) / B
    return z_out.reshape(B, C, H, W), {"kl_loss": kl_loss}


if __name__ == "__main__":
    key = jax.random.PRNGKey(0)
    kz, kn = jax.random.split(key)

    B, C, H, W = 2, 4, 16, 16
    z = jax.random.normal(kz, (B, 2 * C, H, W), dtype=jnp.float32)
    noise = jax.random.normal(kn, (B, C, H, W), dtype=jnp.float32)

    # sample() path
    z_sampled, log = diagonal_gaussian_regularizer(z, noise, sample=True)
    jax.block_until_ready((z_sampled, log["kl_loss"]))

    # Pure-JAX reference.
    mean, logvar = jnp.split(z, 2, axis=1)
    logvar_c = jnp.clip(logvar, -30.0, 20.0)
    std = jnp.exp(0.5 * logvar_c)
    var = jnp.exp(logvar_c)
    z_ref = mean + std * noise
    kl_per_b = 0.5 * jnp.sum(mean * mean + var - 1.0 - logvar_c, axis=(1, 2, 3))
    kl_ref = jnp.sum(kl_per_b) / B

    assert z_sampled.shape == (B, C, H, W)
    assert jnp.allclose(z_sampled, z_ref, atol=1e-5), "sample mismatch"
    assert jnp.allclose(log["kl_loss"], kl_ref, rtol=1e-4, atol=1e-3), "kl mismatch"

    # mode() path (sample=False): z_out == mean, same kl_loss, no noise stream.
    z_mode, log_mode = diagonal_gaussian_regularizer(z, sample=False)
    jax.block_until_ready((z_mode, log_mode["kl_loss"]))
    assert jnp.allclose(z_mode, mean, atol=1e-6), "mode mismatch"
    assert jnp.allclose(log_mode["kl_loss"], kl_ref, rtol=1e-4, atol=1e-3), "mode kl mismatch"

    print("KERNEL_OK")
</pallas_src>

<mosaic_0001>
module attributes {stable_mosaic.version = 11 : i64} {
  func.func @_dgr_sample_kernel(%arg0: i32, %arg1: i32, %arg2: memref<1x2x8x128xf32, #tpu.memory_space<vmem>>, %arg3: memref<1x8x128xf32, #tpu.memory_space<vmem>>, %arg4: memref<1x8x128xf32, #tpu.memory_space<vmem>>, %arg5: memref<1x1x1x128xf32, #tpu.memory_space<vmem>>) attributes {dimension_semantics = [#tpu.dimension_semantics<parallel>, #tpu.dimension_semantics<parallel>], iteration_bounds = array<i64: 2, 1>, scalar_prefetch = 0 : i64, scratch_operands = 0 : i64, tpu.core_type = #tpu.core_type<tc>, window_params = [{transform_indices = @transform_0, window_bounds = array<i64: 1, 2, 8, 128>}, {transform_indices = @transform_1, window_bounds = array<i64: 1, 8, 128>}, {transform_indices = @transform_2, window_bounds = array<i64: 1, 8, 128>}, {transform_indices = @transform_3, window_bounds = array<i64: 1, 1, 1, 128>}]} {
    %c0 = arith.constant 0 : index
    %c0_0 = arith.constant 0 : index
    %c0_1 = arith.constant 0 : index
    %c0_2 = arith.constant 0 : index
    %0 = vector.load %arg2[%c0, %c0_0, %c0_1, %c0_2] : memref<1x2x8x128xf32, #tpu.memory_space<vmem>>, vector<1x1x8x128xf32>
    %1 = vector.shape_cast %0 : vector<1x1x8x128xf32> to vector<8x128xf32>
    %c0_3 = arith.constant 0 : index
    %c1 = arith.constant 1 : index
    %c0_4 = arith.constant 0 : index
    %c0_5 = arith.constant 0 : index
    %2 = vector.load %arg2[%c0_3, %c1, %c0_4, %c0_5] : memref<1x2x8x128xf32, #tpu.memory_space<vmem>>, vector<1x1x8x128xf32>
    %3 = vector.shape_cast %2 : vector<1x1x8x128xf32> to vector<8x128xf32>
    %cst = arith.constant -3.000000e+01 : f32
    %cst_6 = arith.constant 2.000000e+01 : f32
    %4 = vector.broadcast %cst : f32 to vector<8x128xf32>
    %5 = arith.maximumf %4, %3 : vector<8x128xf32>
    %6 = vector.broadcast %cst_6 : f32 to vector<8x128xf32>
    %7 = arith.minimumf %6, %5 : vector<8x128xf32>
    %cst_7 = arith.constant 5.000000e-01 : f32
    %8 = vector.broadcast %cst_7 : f32 to vector<8x128xf32>
    %9 = arith.mulf %8, %7 : vector<8x128xf32>
    %10 = math.exp %9 : vector<8x128xf32>
    %11 = arith.mulf %10, %10 : vector<8x128xf32>
    %c0_8 = arith.constant 0 : index
    %c0_9 = arith.constant 0 : index
    %c0_10 = arith.constant 0 : index
    %12 = vector.load %arg3[%c0_8, %c0_9, %c0_10] : memref<1x8x128xf32, #tpu.memory_space<vmem>>, vector<1x8x128xf32>
    %13 = vector.shape_cast %12 : vector<1x8x128xf32> to vector<8x128xf32>
    %14 = arith.mulf %10, %13 : vector<8x128xf32>
    %15 = arith.addf %1, %14 : vector<8x128xf32>
    %c0_11 = arith.constant 0 : index
    %c0_12 = arith.constant 0 : index
    %c0_13 = arith.constant 0 : index
    %16 = vector.load %arg4[%c0_11, %c0_12, %c0_13] : memref<1x8x128xf32, #tpu.memory_space<vmem>>, vector<1x8x128xf32>
    %17 = vector.shape_cast %16 : vector<1x8x128xf32> to vector<8x128xf32>
    %18 = vector.shape_cast %15 : vector<8x128xf32> to vector<1x8x128xf32>
    tpu.vector_store %arg4[%c0_11, %c0_12, %c0_13], %18 {strides = array<i32>} : memref<1x8x128xf32, #tpu.memory_space<vmem>>, vector<1x8x128xf32>,
    %19 = arith.mulf %1, %1 : vector<8x128xf32>
    %20 = arith.addf %19, %11 : vector<8x128xf32>
    %cst_14 = arith.constant 1.000000e+00 : f32
    %21 = vector.broadcast %cst_14 : f32 to vector<8x128xf32>
    %22 = arith.subf %20, %21 : vector<8x128xf32>
    %23 = arith.subf %22, %7 : vector<8x128xf32>
    %cst_15 = arith.constant dense<0.000000e+00> : vector<128xf32>
    %24 = vector.multi_reduction <add>, %23, %cst_15 [0] : vector<8x128xf32> to vector<128xf32>
    %25 = vector.shape_cast %24 : vector<128xf32> to vector<1x128xf32>
    %c0_16 = arith.constant 0 : index
    %c0_17 = arith.constant 0 : index
    %c0_18 = arith.constant 0 : index
    %c0_19 = arith.constant 0 : index
    %26 = vector.load %arg5[%c0_16, %c0_17, %c0_18, %c0_19] : memref<1x1x1x128xf32, #tpu.memory_space<vmem>>, vector<1x1x1x128xf32>
    %27 = vector.shape_cast %26 : vector<1x1x1x128xf32> to vector<1x128xf32>
    %28 = vector.shape_cast %25 : vector<1x128xf32> to vector<1x1x1x128xf32>
    tpu.vector_store %arg5[%c0_16, %c0_17, %c0_18, %c0_19], %28 {strides = array<i32>} : memref<1x1x1x128xf32, #tpu.memory_space<vmem>>, vector<1x1x1x128xf32>,
    return
  }
  func.func @transform_0(%arg0: i32, %arg1: i32) -> (i32, i32, i32, i32) {
    %c0_i32 = arith.constant 0 : i32
    %c0_i32_0 = arith.constant 0 : i32
    %c0_i32_1 = arith.constant 0 : i32
    return %arg0, %c0_i32, %arg1, %c0_i32_0 : i32, i32, i32, i32
  }
  func.func @transform_1(%arg0: i32, %arg1: i32) -> (i32, i32, i32) {
    %c0_i32 = arith.constant 0 : i32
    %c0_i32_0 = arith.constant 0 : i32
    return %arg0, %arg1, %c0_i32 : i32, i32, i32
  }
  func.func @transform_2(%arg0: i32, %arg1: i32) -> (i32, i32, i32) {
    %c0_i32 = arith.constant 0 : i32
    %c0_i32_0 = arith.constant 0 : i32
    return %arg0, %arg1, %c0_i32 : i32, i32, i32
  }
  func.func @transform_3(%arg0: i32, %arg1: i32) -> (i32, i32, i32, i32) {
    %c0_i32 = arith.constant 0 : i32
    %c0_i32_0 = arith.constant 0 : i32
    %c0_i32_1 = arith.constant 0 : i32
    return %arg0, %arg1, %c0_i32, %c0_i32_0 : i32, i32, i32, i32
  }
}

</mosaic_0001>

<llo_original>
// kernel: tpu_custom_call.1
$region0: #{tpu_custom_call.1}
  #allocation0 [shape = 'u32[]', space=smem, size = 0x4, offset = 0x4, fixed_abs, tag = 'smem constant byte address 0x4 - core index']
  #allocation1 [shape = 'u32[144,128]{1,0:T(1,128)}', space=vmem, size = 0x12000, scoped, tag = 'internal scratch']
  %s0 = inlined_call_operand.hbm [shape: f32[2,2,8,128], index: 0, kind: input, shape index: {}]
  %s1 = inlined_call_operand.hbm [shape: f32[2,8,128], index: 1, kind: input, shape index: {}]
  %s2 = inlined_call_operand.hbm [shape: f32[2,8,128], index: 2, kind: output, shape index: {0}]
  %s3 = inlined_call_operand.hbm [shape: f32[2,1,1,128], index: 3, kind: output, shape index: {1}]
  %4 = xla_tuple %s2, %s3
  %s5 = sld [smem:[#allocation0]]
  $region57: #{tpu_custom_call.1} parent=0
    _
  %s7 = ssub.s32 1, %s5
  %s8 = scalar_select 0, %s7, %s5
  $region1: #{tpu_custom_call.1} parent=0
    #allocation2 [shape = 'u8[16384]{0}', space=vmem, size = 0x4000, scoped, tag = 'input window, operand 0']
    #allocation3 [shape = 's32[2]{0}', space=sflag, size = 0x8, scoped, tag = 'scoped memory for tpu_custom_call.1']
    #allocation4 [shape = 's32[2]{0}', space=sflag, size = 0x8, scoped, tag = 'scoped memory for tpu_custom_call.1']
    #allocation5 [shape = 'u8[8192]{0}', space=vmem, size = 0x2000, scoped, tag = 'input window, operand 1']
    #allocation6 [shape = 's32[2]{0}', space=sflag, size = 0x8, scoped, tag = 'scoped memory for tpu_custom_call.1']
    #allocation7 [shape = 'u8[8192]{0}', space=vmem, size = 0x2000, scoped, tag = 'output window, operand 0']
    #allocation8 [shape = 'u8[1024]{0}', space=vmem, size = 0x400, scoped, tag = 'output window, operand 1']
    #allocation9 [shape = 's32[2]{0}', space=sflag, size = 0x8, scoped, tag = 'scoped memory for tpu_custom_call.1']
    %9 = vsyncpa [#allocation3], 0
    %s10 = scalar_lea.sflag [#allocation3], 1
    %11 = vsyncpa %s10, 0
    %12 = vsyncpa [#allocation6], 0
    %s13 = scalar_lea.sflag [#allocation6], 1
    %14 = vsyncpa %s13, 0
    %15 = vsyncpa [#allocation4], 0
    %s16 = scalar_lea.sflag [#allocation4], 1
    %17 = vsyncpa %s16, 0
    %18 = vsyncpa [#allocation9], 0
    %s19 = scalar_lea.sflag [#allocation9], 1
    %20 = vsyncpa %s19, 0
    loop: start=0, step=1, limit=4
    $region2: #{tpu_custom_call.1} parent=1 // loop_pre_header
      _
    $region3: #{tpu_custom_call.1} parent=1 // loop_header
      %s22 = sphi 0, %s26
      %p23 = scmp.ge.s32.totalorder %s22, 4
      %s29 = sphi 0, %s41
      %s30 = sphi 0, %s37
      %s31 = sphi 0, %s29
      %s32 = sphi 0, %s30
      %s33 = sphi 0, %s31
      %s34 = sphi 0, %s32
      %s46 = sphi 0, %s48
      %s49 = sphi 0, %s46
      %s50 = sphi 0, %s49
      %s66 = sphi 0, %s50
      %s74 = sphi 0, %s76
      %s77 = sphi 0, %s74
      %s78 = sphi 0, %s77
      %s94 = sphi 0, %s78
      %s102 = sphi 0, %s104
      %s105 = sphi 0, %s102
      %s106 = sphi 0, %s105
      %s122 = sphi 0, %s106
      %s130 = sphi 0, %s132
      %s133 = sphi 0, %s130
      %s134 = sphi 0, %s133
      %s150 = sphi 0, %s134
    $region4: #{tpu_custom_call.1} parent=1 // loop_header_branch
      %25 = sbr.rel (%p23) target = $region8
    $region5: #{tpu_custom_call.1} parent=1 // loop_body
      %s27 = ssub.s32 %s22, 1
      %s28 = ssub.s32 %s22, 2
      %s35 = sadd.s32 1, %s30
      %p36 = scmp.ge.s32.totalorder %s35, 1
      %s37 = scalar_select %p36, 0, %s35
      %s38 = sadd.s32 1, %s29
      %s39 = scalar_select %p36, %s38, %s29
      %p40 = scmp.ge.s32.totalorder %s39, 2
      %s41 = scalar_select %p40, 0, %s39
      %s42 = ssub.s32 %s29, %s41
      %s43 = ssub.s32 %s30, %s37
      %s44 = sor.u32 %s42, %s43
      %p45 = scmp.eq.s32.totalorder %s44, 0
      %s47 = sadd.s32 %s46, 1
      %s48 = scalar_select %p45, %s46, %s47
      %p51 = pneg %p45
      %p52 = scmp.eq.s32.totalorder %s22, 1
      %p53 = por %p51, %p52
      %p54 = scmp.ne.s32.totalorder %s46, %s49
      %p55 = scmp.eq.s32.totalorder %s22, 0
      %p56 = por %p54, %p55
      %p57 = scmp.ne.s32.totalorder %s46, %s49
      %p58 = scmp.eq.s32.totalorder %s27, 1
      %p59 = por %p57, %p58
      %p60 = scmp.ne.s32.totalorder %s49, %s50
      %p61 = scmp.eq.s32.totalorder %s27, 0
      %p62 = por %p60, %p61
      %p63 = scmp.ne.s32.totalorder %s49, %s50
      %p64 = scmp.eq.s32.totalorder %s28, 1
      %p65 = por %p63, %p64
      %p67 = scmp.ne.s32.totalorder %s50, %s66
      %p68 = scmp.eq.s32.totalorder %s28, 0
      %p69 = por %p67, %p68
      %s70 = ssub.s32 %s29, %s41
      %s71 = ssub.s32 %s30, %s37
      %s72 = sor.u32 %s70, %s71
      %p73 = scmp.eq.s32.totalorder %s72, 0
      %s75 = sadd.s32 %s74, 1
      %s76 = scalar_select %p73, %s74, %s75
      %p79 = pneg %p73
      %p80 = scmp.eq.s32.totalorder %s22, 1
      %p81 = por %p79, %p80
      %p82 = scmp.ne.s32.totalorder %s74, %s77
      %p83 = scmp.eq.s32.totalorder %s22, 0
      %p84 = por %p82, %p83
      %p85 = scmp.ne.s32.totalorder %s74, %s77
      %p86 = scmp.eq.s32.totalorder %s27, 1
      %p87 = por %p85, %p86
      %p88 = scmp.ne.s32.totalorder %s77, %s78
      %p89 = scmp.eq.s32.totalorder %s27, 0
      %p90 = por %p88, %p89
      %p91 = scmp.ne.s32.totalorder %s77, %s78
      %p92 = scmp.eq.s32.totalorder %s28, 1
      %p93 = por %p91, %p92
      %p95 = scmp.ne.s32.totalorder %s78, %s94
      %p96 = scmp.eq.s32.totalorder %s28, 0
      %p97 = por %p95, %p96
      %s98 = ssub.s32 %s29, %s41
      %s99 = ssub.s32 %s30, %s37
      %s100 = sor.u32 %s98, %s99
      %p101 = scmp.eq.s32.totalorder %s100, 0
      %s103 = sadd.s32 %s102, 1
      %s104 = scalar_select %p101, %s102, %s103
      %p107 = pneg %p101
      %p108 = scmp.eq.s32.totalorder %s22, 1
      %p109 = por %p107, %p108
      %p110 = scmp.ne.s32.totalorder %s102, %s105
      %p111 = scmp.eq.s32.totalorder %s22, 0
      %p112 = por %p110, %p111
      %p113 = scmp.ne.s32.totalorder %s102, %s105
      %p114 = scmp.eq.s32.totalorder %s27, 1
      %p115 = por %p113, %p114
      %p116 = scmp.ne.s32.totalorder %s105, %s106
      %p117 = scmp.eq.s32.totalorder %s27, 0
      %p118 = por %p116, %p117
      %p119 = scmp.ne.s32.totalorder %s105, %s106
      %p120 = scmp.eq.s32.totalorder %s28, 1
      %p121 = por %p119, %p120
      %p123 = scmp.ne.s32.totalorder %s106, %s122
      %p124 = scmp.eq.s32.totalorder %s28, 0
      %p125 = por %p123, %p124
      %s126 = ssub.s32 %s29, %s41
      %s127 = ssub.s32 %s30, %s37
      %s128 = sor.u32 %s126, %s127
      %p129 = scmp.eq.s32.totalorder %s128, 0
      %s131 = sadd.s32 %s130, 1
      %s132 = scalar_select %p129, %s130, %s131
      %p135 = pneg %p129
      %p136 = scmp.eq.s32.totalorder %s22, 1
      %p137 = por %p135, %p136
      %p138 = scmp.ne.s32.totalorder %s130, %s133
      %p139 = scmp.eq.s32.totalorder %s22, 0
      %p140 = por %p138, %p139
      %p141 = scmp.ne.s32.totalorder %s130, %s133
      %p142 = scmp.eq.s32.totalorder %s27, 1
      %p143 = por %p141, %p142
      %p144 = scmp.ne.s32.totalorder %s133, %s134
      %p145 = scmp.eq.s32.totalorder %s27, 0
      %p146 = por %p144, %p145
      %p147 = scmp.ne.s32.totalorder %s133, %s134
      %p148 = scmp.eq.s32.totalorder %s28, 1
      %p149 = por %p147, %p148
      %p151 = scmp.ne.s32.totalorder %s134, %s150
      %p152 = scmp.eq.s32.totalorder %s28, 0
      %p153 = por %p151, %p152
      %p154 = scmp.le.s32.totalorder 1, %s22
      %p155 = scmp.lt.s32.totalorder %s22, 3
      %p156 = pnand %p154, %p155
      %p157 = pneg %p156
      // Predicated region
      $region9: #{tpu_custom_call.1} parent=5 // pred_check
        _
      $region10: #{tpu_custom_call.1} parent=5 // pred_check_branch
        %159 = sbr.rel (%p156) target = $region12
      $region11: #{tpu_custom_call.1} parent=5 // pred_region
        %s160 = ssub.s32 %s22, 1
      $region12: #{tpu_custom_call.1} parent=5 // pred_fallthru
        _
      %p161 = scmp.lt.s32.totalorder %s22, 2
      // Predicated region
      $region13: #{tpu_custom_call.1} parent=5 // pred_check
        %p162 = pneg %p161
      $region14: #{tpu_custom_call.1} parent=5 // pred_check_branch
        %164 = sbr.rel (%p162) target = $region16
      $region15: #{tpu_custom_call.1} parent=5 // pred_region
        // Predicated region
        $region17: #{tpu_custom_call.1} parent=15 // pred_check
          %p165 = pneg %p56
        $region18: #{tpu_custom_call.1} parent=15 // pred_check_branch
          %167 = sbr.rel (%p165) target = $region20
        $region19: #{tpu_custom_call.1} parent=15 // pred_region
          %s168 = sand.u32 %s46, 1
          %s169 = scalar_lea.sflag [#allocation3], %s168
          %s170 = sand.u32 %s46, 1
          %s171 = smul.addr %s170, 16
          %s172 = scalar_lea.vmem [#allocation2], %s171
          %s174 = ssub.s32 256, 256
          %175 = vsyncadd %s169, %s174
          %s176 = smul.addr %s29, 2
          %s177 = sadd.s32 %s30, %s176
          %s178 = smul.addr %s177, 128
          %s179 = scalar_lea.hbm %s0, %s178
          %s180 = sshll.u32 %s172, 4
          %s181 = int_to_ptr.vmem [resolvable:$true] %s180
          %186 = dma.hbm_to_vmem [thread:$0]  %s179, 256, %s181, %s169, 128, 128, 8
        $region20: #{tpu_custom_call.1} parent=15 // pred_fallthru
          _
        // Predicated region
        $region21: #{tpu_custom_call.1} parent=15 // pred_check
          %p187 = pneg %p84
        $region22: #{tpu_custom_call.1} parent=15 // pred_check_branch
          %189 = sbr.rel (%p187) target = $region24
        $region23: #{tpu_custom_call.1} parent=15 // pred_region
          %s190 = sand.u32 %s74, 1
          %s191 = scalar_lea.sflag [#allocation6], %s190
          %s192 = sand.u32 %s74, 1
          %s193 = smul.addr %s192, 8
          %s194 = scalar_lea.vmem [#allocation5], %s193
          %s196 = ssub.s32 128, 128
          %197 = vsyncadd %s191, %s196
          %s198 = sadd.s32 %s30, %s29
          %s199 = smul.addr %s198, 128
          %s200 = scalar_lea.hbm %s1, %s199
          %s202 = sshll.u32 %s194, 4
          %s203 = int_to_ptr.vmem [resolvable:$true] %s202
          %205 = dma.hbm_to_vmem [thread:$0]  %s200, 128, %s203, %s191
        $region24: #{tpu_custom_call.1} parent=15 // pred_fallthru
          _
      $region16: #{tpu_custom_call.1} parent=5 // pred_fallthru
        _
      %p206 = scmp.le.s32.totalorder 1, %s22
      %p207 = scmp.lt.s32.totalorder %s22, 3
      %p208 = pnand %p206, %p207
      %p209 = pneg %p208
      // Predicated region
      $region25: #{tpu_custom_call.1} parent=5 // pred_check
        _
      $region26: #{tpu_custom_call.1} parent=5 // pred_check_branch
        %211 = sbr.rel (%p208) target = $region28
      $region27: #{tpu_custom_call.1} parent=5 // pred_region
        %s212 = ssub.s32 %s22, 1
        %s213 = sand.u32 %s49, 1
        %s214 = scalar_lea.sflag [#allocation3], %s213
        %s215 = sand.u32 %s49, 1
        %s216 = smul.addr %s215, 16
        %s217 = scalar_lea.vmem [#allocation2], %s216
        // Predicated region
        $region29: #{tpu_custom_call.1} parent=27 // pred_check
          %p218 = pneg %p62
        $region30: #{tpu_custom_call.1} parent=27 // pred_check_branch
          %220 = sbr.rel (%p218) target = $region32
        $region31: #{tpu_custom_call.1} parent=27 // pred_region
          %221 = dma.done %s214, 256
        $region32: #{tpu_custom_call.1} parent=27 // pred_fallthru
          _
        %s222 = sand.u32 %s77, 1
        %s223 = scalar_lea.sflag [#allocation6], %s222
        %s224 = sand.u32 %s77, 1
        %s225 = smul.addr %s224, 8
        %s226 = scalar_lea.vmem [#allocation5], %s225
        // Predicated region
        $region33: #{tpu_custom_call.1} parent=27 // pred_check
          %p227 = pneg %p90
        $region34: #{tpu_custom_call.1} parent=27 // pred_check_branch
          %229 = sbr.rel (%p227) target = $region36
        $region35: #{tpu_custom_call.1} parent=27 // pred_region
          %230 = dma.done %s223, 128
        $region36: #{tpu_custom_call.1} parent=27 // pred_fallthru
          _
        %s231 = sand.u32 %s49, 1
        %s232 = scalar_lea.sflag [#allocation3], %s231
        %s233 = sand.u32 %s49, 1
        %s234 = smul.addr %s233, 16
        %s235 = scalar_lea.vmem [#allocation2], %s234
        %p236 = pneg %p62
        %p237 = pneg %p59
        %s238 = sand.u32 %s77, 1
        %s239 = scalar_lea.sflag [#allocation6], %s238
        %s240 = sand.u32 %s77, 1
        %s241 = smul.addr %s240, 8
        %s242 = scalar_lea.vmem [#allocation5], %s241
        %p243 = pneg %p90
        %p244 = pneg %p87
        %p245 = pneg %p118
        %p246 = pneg %p115
        %s247 = sand.u32 %s105, 1
        %s248 = scalar_lea.sflag [#allocation4], %s247
        %s249 = sand.u32 %s105, 1
        %s250 = smul.addr %s249, 8
        %s251 = scalar_lea.vmem [#allocation7], %s250
        %p252 = pneg %p146
        %p253 = pneg %p143
        %s254 = sand.u32 %s133, 1
        %s255 = scalar_lea.sflag [#allocation9], %s254
        %s256 = sand.u32 %s133, 1
        %s257 = scalar_lea.vmem [#allocation8], %s256
        %v258 = vld [vmem:[%s217] sm:$0xff]
        %s259 = scalar_lea.vmem %s217, 8 [#allocation2]
        %v260 = vld [vmem:[%s259] sm:$0xff]
        %v261 = vmax.f32 %v260, -30.0
        %v262 = vmin.f32 %v261, 20.0
        %v263 = vmul.f32 %v262, 0.5
        %v264 = vmul.f32 %v263, 1.442695
        %v265 = vpow.pop %v264
        %v266 = vmul.f32 %v265, %v265
        %v267 = vld [vmem:[%s226] sm:$0xff]
        %v268 = vmul.f32 %v265, %v267
        %v269 = vadd.f32 %v258, %v268
        %270 = vst [vmem:[%s251] sm:$0xff] %v269
        %v271 = vmul.f32 %v258, %v258
        %v272 = vadd.f32 %v271, %v266
        %v273 = vsub.f32 %v272, 1.0
        %v274 = vsub.f32 %v273, %v262
        %v275 = vrot.slane %v274, 4
        %v276 = vadd.f32 %v274, %v275
        %v277 = vrot.slane %v276, 2
        %v278 = vadd.f32 %v276, %v277
        %v279 = vrot.slane %v278, 1
        %v280 = vadd.f32 %v278, %v279
        %281 = vst [vmem:[%s257] sm:$0x1] %v280
        %s282 = sand.u32 %s105, 1
        %s283 = scalar_lea.sflag [#allocation4], %s282
        %s284 = sand.u32 %s105, 1
        %s285 = smul.addr %s284, 8
        %s286 = scalar_lea.vmem [#allocation7], %s285
        %s287 = sand.u32 %s133, 1
        %s288 = scalar_lea.sflag [#allocation9], %s287
        %s289 = sand.u32 %s133, 1
        %s290 = scalar_lea.vmem [#allocation8], %s289
        // Predicated region
        $region37: #{tpu_custom_call.1} parent=27 // pred_check
          %p291 = pneg %p115
        $region38: #{tpu_custom_call.1} parent=27 // pred_check_branch
          %293 = sbr.rel (%p291) target = $region40
        $region39: #{tpu_custom_call.1} parent=27 // pred_region
          %s295 = ssub.s32 128, 128
          %296 = vsyncadd %s283, %s295
          %s297 = sadd.s32 %s32, %s31
          %s298 = smul.addr %s297, 128
          %s299 = scalar_lea.hbm %s2, %s298
          %s301 = sshll.u32 %s286, 4
          %s302 = int_to_ptr.vmem [resolvable:$true] %s301
          %304 = dma.vmem_to_hbm [thread:$0]  %s302, 128, %s299, %s283
        $region40: #{tpu_custom_call.1} parent=27 // pred_fallthru
          _
        // Predicated region
        $region41: #{tpu_custom_call.1} parent=27 // pred_check
          %p305 = pneg %p143
        $region42: #{tpu_custom_call.1} parent=27 // pred_check_branch
          %307 = sbr.rel (%p305) target = $region44
        $region43: #{tpu_custom_call.1} parent=27 // pred_region
          %s309 = ssub.s32 16, 16
          %310 = vsyncadd %s288, %s309
          %s311 = sadd.s32 %s32, %s31
          %s312 = smul.addr %s311, 16
          %s313 = scalar_lea.hbm %s3, %s312
          %s315 = sshll.u32 %s290, 4
          %s316 = int_to_ptr.vmem [resolvable:$true] %s315
          %318 = dma.vmem_to_hbm [thread:$0]  %s316, 16, %s313, %s288
        $region44: #{tpu_custom_call.1} parent=27 // pred_fallthru
          _
      $region28: #{tpu_custom_call.1} parent=5 // pred_fallthru
        _
      %p319 = scmp.le.s32.totalorder 2, %s22
      // Predicated region
      $region45: #{tpu_custom_call.1} parent=5 // pred_check
        %p320 = pneg %p319
      $region46: #{tpu_custom_call.1} parent=5 // pred_check_branch
        %322 = sbr.rel (%p320) target = $region48
      $region47: #{tpu_custom_call.1} parent=5 // pred_region
        %s323 = ssub.s32 %s22, 2
        // Predicated region
        $region49: #{tpu_custom_call.1} parent=47 // pred_check
          %p324 = pneg %p121
        $region50: #{tpu_custom_call.1} parent=47 // pred_check_branch
          %326 = sbr.rel (%p324) target = $region52
        $region51: #{tpu_custom_call.1} parent=47 // pred_region
          %s327 = sand.u32 %s106, 1
          %s328 = scalar_lea.sflag [#allocation4], %s327
          %s329 = sand.u32 %s106, 1
          %s330 = smul.addr %s329, 8
          %s331 = scalar_lea.vmem [#allocation7], %s330
          %332 = dma.done %s328, 128
        $region52: #{tpu_custom_call.1} parent=47 // pred_fallthru
          _
        // Predicated region
        $region53: #{tpu_custom_call.1} parent=47 // pred_check
          %p333 = pneg %p149
        $region54: #{tpu_custom_call.1} parent=47 // pred_check_branch
          %335 = sbr.rel (%p333) target = $region56
        $region55: #{tpu_custom_call.1} parent=47 // pred_region
          %s336 = sand.u32 %s134, 1
          %s337 = scalar_lea.sflag [#allocation9], %s336
          %s338 = sand.u32 %s134, 1
          %s339 = scalar_lea.vmem [#allocation8], %s338
          %340 = dma.done %s337, 16
        $region56: #{tpu_custom_call.1} parent=47 // pred_fallthru
          _
      $region48: #{tpu_custom_call.1} parent=5 // pred_fallthru
        _
    $region6: #{tpu_custom_call.1} parent=1 // loop_footer
      %s26 = sadd.s32 1, %s22
    $region7: #{tpu_custom_call.1} parent=1 // loop_footer_branch
      %21 = sbr.rel target = $region3
    $region8: #{tpu_custom_call.1} parent=1 // loop_exit
      _
    %341 = vsyncpa [#allocation3], 1
    %s342 = scalar_lea.sflag [#allocation3], 1
    %343 = vsyncpa %s342, 1
    %344 = vsyncpa [#allocation6], 1
    %s345 = scalar_lea.sflag [#allocation6], 1
    %346 = vsyncpa %s345, 1
    %347 = vsyncpa [#allocation4], 1
    %s348 = scalar_lea.sflag [#allocation4], 1
    %349 = vsyncpa %s348, 1
    %350 = vsyncpa [#allocation9], 1
    %s351 = scalar_lea.sflag [#allocation9], 1
    %352 = vsyncpa %s351, 1

</llo_original>
